<compile_context>
chip_gen: v7x
topology: tpu7x:2x2x1
jax: 0.10.0
libtpu: 0.0.40
codegen_flags: <defaults>
</compile_context>

<pallas_src>
import math

import jax
import jax.numpy as jnp
from jax.experimental import pallas as pl
from jax.experimental.pallas import tpu as pltpu

_MM_DTYPE = jnp.bfloat16  # MXU-native operand dtype; accumulation stays f32.


# ----------------------------- fused Pallas kernel -----------------------------

def _net_fused_kernel(
    a2_blk_ref, a2s_ref, feats_ref,
    fc1_w_ref, fc1_b_ref,
    w12_ref, bias1_ref,
    wd12_ref, biasd_ref,
    fc2_w_ref, fc2_b_ref,
    pre_x_ref, xs_ref, fin_ref, loss_ref,
):
    GN, H = pre_x_ref.shape
    G, N, _ = a2s_ref.shape

    # Hoist weight loads / casts / bias broadcasts once: the per-graph loops
    # below are unrolled at trace time and JAX does not CSE broadcast_in_dim.
    fc1_w = fc1_w_ref[...].astype(_MM_DTYPE)
    w12 = w12_ref[...].astype(_MM_DTYPE)
    wd12 = wd12_ref[...].astype(_MM_DTYPE)
    fc2_w = fc2_w_ref[...].astype(_MM_DTYPE)
    a2_blk = a2_blk_ref[...].astype(_MM_DTYPE)
    fc1_b = jnp.broadcast_to(fc1_b_ref[...], (GN, H))

    # ---- phase 1: fc1, batched over ALL graphs (one (G*N,F)@(F,H) matmul) ----
    pre_x = jnp.dot(feats_ref[...].astype(_MM_DTYPE), fc1_w,
                    preferred_element_type=jnp.float32) + fc1_b
    pre_x_ref[...] = pre_x

    # ---- folded conv1 -> conv2, batched via block-diagonal A^2 ----
    #   normal = A^2 @ (pre_x @ (W1 W2)) + [rowsum(A)*(b1 W2) + b2]   (bias precomputed)
    xw = jnp.dot(pre_x.astype(_MM_DTYPE), w12, preferred_element_type=jnp.float32)
    normal_all = jnp.dot(a2_blk, xw.astype(_MM_DTYPE),
                         preferred_element_type=jnp.float32) + bias1_ref[...]
    normal = [normal_all[g * N:(g + 1) * N, :] for g in range(G)]

    # ---- phase 2: dconv1 -> dconv2, SEQUENTIAL over graphs (torch mutates
    #      normal_x in place; this dependency is preserved).  Running total
    #      replaces the O(G^2) re-summation. ----
    total = normal[0]
    for g in range(1, G):
        total = total + normal[g]

    xs = []
    for i in range(G):
        sum_x = total - normal[i]                       # sum of current normal_x[j], j != i
        xw = jnp.dot(sum_x.astype(_MM_DTYPE), wd12,
                     preferred_element_type=jnp.float32)
        h = jnp.dot(a2s_ref[i].astype(_MM_DTYPE), xw.astype(_MM_DTYPE),
                    preferred_element_type=jnp.float32) + biasd_ref[i]
        total = sum_x + h                               # == in-place normal_x[i] = h
        xs.append(h)
        xs_ref[i * N:(i + 1) * N, :] = h

    # ---- fin_feat = sigmoid(xs[0] * ... * xs[G-2])  (matches range(1, len(xs)-1)) ----
    fin = xs[0]
    for k in range(1, G - 1):
        fin = fin * xs[k]
    fin = jax.nn.sigmoid(fin)                           # EUP, kept in f32
    fin_ref[...] = fin

    # ---- fc2 ----
    loss_ref[...] = (
        jnp.dot(fin.astype(_MM_DTYPE), fc2_w, preferred_element_type=jnp.float32)
        + fc2_b_ref[...]
    )


# ----------------------------- kernel wrapper -----------------------------

def _block_diag(blocks):
    """(G, N, N) -> block-diagonal (G*N, G*N)."""
    G, N, _ = blocks.shape
    out = jnp.zeros((G * N, G * N), blocks.dtype)
    for g in range(G):
        out = out.at[g * N:(g + 1) * N, g * N:(g + 1) * N].set(blocks[g])
    return out


def net_forward(params, adjs, feats):
    """Fused forward: one pallas_call for the whole Net.forward()."""
    G, N, F = feats.shape
    H = params["fc1_w"].shape[1]
    GN = G * N

    # ---- off-hot-path precompute (plain XLA): A^2, block-diag A^2, folded
    #      weights and the exact bias corrections of the folded GCN pairs ----
    a2s = jnp.matmul(adjs, adjs)                         # (G, N, N)
    a2_blk = _block_diag(a2s)                            # (G*N, G*N)
    rowsum = jnp.sum(adjs, axis=2)                       # (G, N) == A @ 1

    w12 = params["conv1_w"] @ params["conv2_w"]          # (H, H)
    b1w2 = params["conv1_b"] @ params["conv2_w"]         # (1, H)
    bias1 = rowsum.reshape(GN, 1) * b1w2 + params["conv2_b"]            # (G*N, H)

    wd12 = params["dconv1_w"] @ params["dconv2_w"]       # (H, H)
    bd1w2 = params["dconv1_b"] @ params["dconv2_w"]      # (1, H)
    biasd = rowsum[:, :, None] * bd1w2[None, :, :] + params["dconv2_b"][None, :, :]  # (G, N, H)

    feats_flat = feats.reshape(GN, F)

    inputs = (
        a2_blk, a2s, feats_flat,
        params["fc1_w"], params["fc1_b"],
        w12, bias1,
        wd12, biasd,
        params["fc2_w"], params["fc2_b"],
    )

    def vmem():
        return pl.BlockSpec(memory_space=pltpu.MemorySpace.VMEM)

    out_shape = (
        jax.ShapeDtypeStruct((GN, H), jnp.float32),      # pre_x (stacked, lane-dense)
        jax.ShapeDtypeStruct((GN, H), jnp.float32),      # xs    (stacked, lane-dense)
        jax.ShapeDtypeStruct((N, H), jnp.float32),       # fin_feat
        jax.ShapeDtypeStruct((N, F), jnp.float32),       # loss_embedding
    )

    pre_x, xs, fin_feat, loss_embedding = pl.pallas_call(
        _net_fused_kernel,
        out_shape=out_shape,
        in_specs=[vmem() for _ in inputs],
        out_specs=tuple(vmem() for _ in out_shape),
    )(*inputs)

    return pre_x.reshape(G, N, H), xs.reshape(G, N, H), fin_feat, loss_embedding


# ----------------------------- glue (plain JAX, off the hot path) -----------------------------

def normalized_adjacency(edge_index, num_nodes):
    """Dense GCN-normalized adjacency: D^-1/2 (A + I) D^-1/2 (duplicate edges accumulate)."""
    src, dst = edge_index[0], edge_index[1]
    a = jnp.zeros((num_nodes, num_nodes), jnp.float32)
    a = a.at[dst, src].add(1.0)                          # message flows src -> dst
    a = a + jnp.eye(num_nodes, dtype=jnp.float32)        # self loops
    deg = jnp.sum(a, axis=1)
    dinv = jax.lax.rsqrt(jnp.maximum(deg, 1e-12))
    return a * dinv[:, None] * dinv[None, :]


# ----------------------------- parameter init -----------------------------

def init_params(key, num_features, hidden):
    ks = jax.random.split(key, 12)

    def torch_linear(kw, kb, fin, fout):
        bound = 1.0 / math.sqrt(fin)
        w = jax.random.uniform(kw, (fin, fout), jnp.float32, -bound, bound)
        b = jax.random.uniform(kb, (1, fout), jnp.float32, -bound, bound)
        return w, b

    def glorot(k, fin, fout):
        bound = math.sqrt(6.0 / (fin + fout))
        return jax.random.uniform(k, (fin, fout), jnp.float32, -bound, bound)

    p = {}
    p["fc1_w"], p["fc1_b"] = torch_linear(ks[0], ks[1], num_features, hidden)
    p["fc2_w"], p["fc2_b"] = torch_linear(ks[2], ks[3], hidden, num_features)
    for name, k in zip(("conv1", "conv2", "dconv1", "dconv2"), ks[4:8]):
        p[f"{name}_w"] = glorot(k, hidden, hidden)
        p[f"{name}_b"] = jnp.zeros((1, hidden), jnp.float32)
    return p


# ----------------------------- main -----------------------------

if __name__ == "__main__":
    key = jax.random.PRNGKey(0)
    NUM_GRAPHS, N_NODES, NUM_FEATURES, HIDDEN, N_EDGES = 3, 16, 8, 128, 32

    k_param, k_data = jax.random.split(key)
    params = init_params(k_param, NUM_FEATURES, HIDDEN)

    data_keys = jax.random.split(k_data, 2 * NUM_GRAPHS)
    feats_list, adjs_list = [], []
    for g in range(NUM_GRAPHS):
        feats_list.append(
            jax.random.normal(data_keys[2 * g], (N_NODES, NUM_FEATURES), jnp.float32)
        )
        edge_index = jax.random.randint(
            data_keys[2 * g + 1], (2, N_EDGES), 0, N_NODES, dtype=jnp.int32
        )
        adjs_list.append(normalized_adjacency(edge_index, N_NODES))

    feats = jnp.stack(feats_list, axis=0)   # (G, N, F)
    adjs = jnp.stack(adjs_list, axis=0)     # (G, N, N)

    fwd = jax.jit(net_forward)
    pre_x, xs, fin_feat, loss_embedding = fwd(params, adjs, feats)
    jax.block_until_ready((pre_x, xs, fin_feat, loss_embedding))

    assert pre_x.shape == (NUM_GRAPHS, N_NODES, HIDDEN)
    assert xs.shape == (NUM_GRAPHS, N_NODES, HIDDEN)
    assert fin_feat.shape == (N_NODES, HIDDEN)
    assert loss_embedding.shape == (N_NODES, NUM_FEATURES)
    print("KERNEL_OK")
</pallas_src>

<mosaic_0001>
module attributes {stable_mosaic.version = 11 : i64} {
  func.func @_net_fused_kernel(%arg0: memref<48x48xf32, #tpu.memory_space<vmem>>, %arg1: memref<3x16x16xf32, #tpu.memory_space<vmem>>, %arg2: memref<48x8xf32, #tpu.memory_space<vmem>>, %arg3: memref<8x128xf32, #tpu.memory_space<vmem>>, %arg4: memref<1x128xf32, #tpu.memory_space<vmem>>, %arg5: memref<128x128xf32, #tpu.memory_space<vmem>>, %arg6: memref<48x128xf32, #tpu.memory_space<vmem>>, %arg7: memref<128x128xf32, #tpu.memory_space<vmem>>, %arg8: memref<3x16x128xf32, #tpu.memory_space<vmem>>, %arg9: memref<128x8xf32, #tpu.memory_space<vmem>>, %arg10: memref<1x8xf32, #tpu.memory_space<vmem>>, %arg11: memref<48x128xf32, #tpu.memory_space<vmem>>, %arg12: memref<48x128xf32, #tpu.memory_space<vmem>>, %arg13: memref<16x128xf32, #tpu.memory_space<vmem>>, %arg14: memref<16x8xf32, #tpu.memory_space<vmem>>) attributes {dimension_semantics = [], scalar_prefetch = 0 : i64, scratch_operands = 0 : i64, tpu.core_type = #tpu.core_type<tc>} {
    %c0 = arith.constant 0 : index
    %c0_0 = arith.constant 0 : index
    %0 = vector.load %arg3[%c0, %c0_0] : memref<8x128xf32, #tpu.memory_space<vmem>>, vector<8x128xf32>
    %1 = arith.truncf %0 : vector<8x128xf32> to vector<8x128xbf16>
    %c0_1 = arith.constant 0 : index
    %c0_2 = arith.constant 0 : index
    %2 = vector.load %arg5[%c0_1, %c0_2] : memref<128x128xf32, #tpu.memory_space<vmem>>, vector<128x128xf32>
    %3 = arith.truncf %2 : vector<128x128xf32> to vector<128x128xbf16>
    %c0_3 = arith.constant 0 : index
    %c0_4 = arith.constant 0 : index
    %4 = vector.load %arg7[%c0_3, %c0_4] : memref<128x128xf32, #tpu.memory_space<vmem>>, vector<128x128xf32>
    %5 = arith.truncf %4 : vector<128x128xf32> to vector<128x128xbf16>
    %c0_5 = arith.constant 0 : index
    %c0_6 = arith.constant 0 : index
    %6 = vector.load %arg9[%c0_5, %c0_6] : memref<128x8xf32, #tpu.memory_space<vmem>>, vector<128x8xf32>
    %7 = arith.truncf %6 : vector<128x8xf32> to vector<128x8xbf16>
    %c0_7 = arith.constant 0 : index
    %c0_8 = arith.constant 0 : index
    %8 = vector.load %arg0[%c0_7, %c0_8] : memref<48x48xf32, #tpu.memory_space<vmem>>, vector<48x48xf32>
    %9 = arith.truncf %8 : vector<48x48xf32> to vector<48x48xbf16>
    %c0_9 = arith.constant 0 : index
    %c0_10 = arith.constant 0 : index
    %10 = vector.load %arg4[%c0_9, %c0_10] : memref<1x128xf32, #tpu.memory_space<vmem>>, vector<1x128xf32>
    %11 = vector.shape_cast %10 : vector<1x128xf32> to vector<1x128xf32>
    %12 = vector.broadcast %11 : vector<1x128xf32> to vector<48x128xf32>
    %c0_11 = arith.constant 0 : index
    %c0_12 = arith.constant 0 : index
    %13 = vector.load %arg2[%c0_11, %c0_12] : memref<48x8xf32, #tpu.memory_space<vmem>>, vector<48x8xf32>
    %14 = arith.truncf %13 : vector<48x8xf32> to vector<48x8xbf16>
    %cst = arith.constant dense<0.000000e+00> : vector<48x128xf32>
    %15 = tpu.matmul %14, %1, %cst {dimension_numbers = #tpu.dot_dimension_numbers<[1], [0], [0], [1], [0, 0, 1, 1], [], []>} : vector<48x8xbf16>, vector<8x128xbf16>, vector<48x128xf32> -> vector<48x128xf32>
    %16 = arith.addf %15, %12 : vector<48x128xf32>
    %c0_13 = arith.constant 0 : index
    %c0_14 = arith.constant 0 : index
    %17 = vector.load %arg11[%c0_13, %c0_14] : memref<48x128xf32, #tpu.memory_space<vmem>>, vector<48x128xf32>
    tpu.vector_store %arg11[%c0_13, %c0_14], %16 {strides = array<i32>} : memref<48x128xf32, #tpu.memory_space<vmem>>, vector<48x128xf32>,
    %18 = arith.truncf %16 : vector<48x128xf32> to vector<48x128xbf16>
    %cst_15 = arith.constant dense<0.000000e+00> : vector<48x128xf32>
    %19 = tpu.matmul %18, %3, %cst_15 {dimension_numbers = #tpu.dot_dimension_numbers<[1], [0], [0], [1], [0, 0, 1, 1], [], []>} : vector<48x128xbf16>, vector<128x128xbf16>, vector<48x128xf32> -> vector<48x128xf32>
    %20 = arith.truncf %19 : vector<48x128xf32> to vector<48x128xbf16>
    %cst_16 = arith.constant dense<0.000000e+00> : vector<48x128xf32>
    %21 = tpu.matmul %9, %20, %cst_16 {dimension_numbers = #tpu.dot_dimension_numbers<[1], [0], [0], [1], [0, 0, 1, 1], [], []>} : vector<48x48xbf16>, vector<48x128xbf16>, vector<48x128xf32> -> vector<48x128xf32>
    %c0_17 = arith.constant 0 : index
    %c0_18 = arith.constant 0 : index
    %22 = vector.load %arg6[%c0_17, %c0_18] : memref<48x128xf32, #tpu.memory_space<vmem>>, vector<48x128xf32>
    %23 = arith.addf %21, %22 : vector<48x128xf32>
    %24 = vector.extract_strided_slice %23 {offsets = [0, 0], sizes = [16, 128], strides = [1, 1]} : vector<48x128xf32> to vector<16x128xf32>
    %25 = vector.extract_strided_slice %23 {offsets = [16, 0], sizes = [16, 128], strides = [1, 1]} : vector<48x128xf32> to vector<16x128xf32>
    %26 = vector.extract_strided_slice %23 {offsets = [32, 0], sizes = [16, 128], strides = [1, 1]} : vector<48x128xf32> to vector<16x128xf32>
    %27 = arith.addf %24, %25 : vector<16x128xf32>
    %28 = arith.addf %27, %26 : vector<16x128xf32>
    %29 = arith.subf %28, %24 : vector<16x128xf32>
    %30 = arith.truncf %29 : vector<16x128xf32> to vector<16x128xbf16>
    %cst_19 = arith.constant dense<0.000000e+00> : vector<16x128xf32>
    %31 = tpu.matmul %30, %5, %cst_19 {dimension_numbers = #tpu.dot_dimension_numbers<[1], [0], [0], [1], [0, 0, 1, 1], [], []>} : vector<16x128xbf16>, vector<128x128xbf16>, vector<16x128xf32> -> vector<16x128xf32>
    %c0_20 = arith.constant 0 : index
    %c0_21 = arith.constant 0 : index
    %c0_22 = arith.constant 0 : index
    %32 = vector.load %arg1[%c0_20, %c0_21, %c0_22] : memref<3x16x16xf32, #tpu.memory_space<vmem>>, vector<1x16x16xf32>
    %33 = vector.shape_cast %32 : vector<1x16x16xf32> to vector<16x16xf32>
    %34 = arith.truncf %33 : vector<16x16xf32> to vector<16x16xbf16>
    %35 = arith.truncf %31 : vector<16x128xf32> to vector<16x128xbf16>
    %cst_23 = arith.constant dense<0.000000e+00> : vector<16x128xf32>
    %36 = tpu.matmul %34, %35, %cst_23 {dimension_numbers = #tpu.dot_dimension_numbers<[1], [0], [0], [1], [0, 0, 1, 1], [], []>} : vector<16x16xbf16>, vector<16x128xbf16>, vector<16x128xf32> -> vector<16x128xf32>
    %c0_24 = arith.constant 0 : index
    %c0_25 = arith.constant 0 : index
    %c0_26 = arith.constant 0 : index
    %37 = vector.load %arg8[%c0_24, %c0_25, %c0_26] : memref<3x16x128xf32, #tpu.memory_space<vmem>>, vector<1x16x128xf32>
    %38 = vector.shape_cast %37 : vector<1x16x128xf32> to vector<16x128xf32>
    %39 = arith.addf %36, %38 : vector<16x128xf32>
    %40 = arith.addf %29, %39 : vector<16x128xf32>
    %c0_27 = arith.constant 0 : index
    %c0_28 = arith.constant 0 : index
    %41 = vector.load %arg12[%c0_27, %c0_28] : memref<48x128xf32, #tpu.memory_space<vmem>>, vector<16x128xf32>
    tpu.vector_store %arg12[%c0_27, %c0_28], %39 {strides = array<i32>} : memref<48x128xf32, #tpu.memory_space<vmem>>, vector<16x128xf32>,
    %42 = arith.subf %40, %25 : vector<16x128xf32>
    %43 = arith.truncf %42 : vector<16x128xf32> to vector<16x128xbf16>
    %cst_29 = arith.constant dense<0.000000e+00> : vector<16x128xf32>
    %44 = tpu.matmul %43, %5, %cst_29 {dimension_numbers = #tpu.dot_dimension_numbers<[1], [0], [0], [1], [0, 0, 1, 1], [], []>} : vector<16x128xbf16>, vector<128x128xbf16>, vector<16x128xf32> -> vector<16x128xf32>
    %c1 = arith.constant 1 : index
    %c0_30 = arith.constant 0 : index
    %c0_31 = arith.constant 0 : index
    %45 = vector.load %arg1[%c1, %c0_30, %c0_31] : memref<3x16x16xf32, #tpu.memory_space<vmem>>, vector<1x16x16xf32>
    %46 = vector.shape_cast %45 : vector<1x16x16xf32> to vector<16x16xf32>
    %47 = arith.truncf %46 : vector<16x16xf32> to vector<16x16xbf16>
    %48 = arith.truncf %44 : vector<16x128xf32> to vector<16x128xbf16>
    %cst_32 = arith.constant dense<0.000000e+00> : vector<16x128xf32>
    %49 = tpu.matmul %47, %48, %cst_32 {dimension_numbers = #tpu.dot_dimension_numbers<[1], [0], [0], [1], [0, 0, 1, 1], [], []>} : vector<16x16xbf16>, vector<16x128xbf16>, vector<16x128xf32> -> vector<16x128xf32>
    %c1_33 = arith.constant 1 : index
    %c0_34 = arith.constant 0 : index
    %c0_35 = arith.constant 0 : index
    %50 = vector.load %arg8[%c1_33, %c0_34, %c0_35] : memref<3x16x128xf32, #tpu.memory_space<vmem>>, vector<1x16x128xf32>
    %51 = vector.shape_cast %50 : vector<1x16x128xf32> to vector<16x128xf32>
    %52 = arith.addf %49, %51 : vector<16x128xf32>
    %53 = arith.addf %42, %52 : vector<16x128xf32>
    %c16 = arith.constant 16 : index
    %c0_36 = arith.constant 0 : index
    %54 = vector.load %arg12[%c16, %c0_36] : memref<48x128xf32, #tpu.memory_space<vmem>>, vector<16x128xf32>
    tpu.vector_store %arg12[%c16, %c0_36], %52 {strides = array<i32>} : memref<48x128xf32, #tpu.memory_space<vmem>>, vector<16x128xf32>,
    %55 = arith.subf %53, %26 : vector<16x128xf32>
    %56 = arith.truncf %55 : vector<16x128xf32> to vector<16x128xbf16>
    %cst_37 = arith.constant dense<0.000000e+00> : vector<16x128xf32>
    %57 = tpu.matmul %56, %5, %cst_37 {dimension_numbers = #tpu.dot_dimension_numbers<[1], [0], [0], [1], [0, 0, 1, 1], [], []>} : vector<16x128xbf16>, vector<128x128xbf16>, vector<16x128xf32> -> vector<16x128xf32>
    %c2 = arith.constant 2 : index
    %c0_38 = arith.constant 0 : index
    %c0_39 = arith.constant 0 : index
    %58 = vector.load %arg1[%c2, %c0_38, %c0_39] : memref<3x16x16xf32, #tpu.memory_space<vmem>>, vector<1x16x16xf32>
    %59 = vector.shape_cast %58 : vector<1x16x16xf32> to vector<16x16xf32>
    %60 = arith.truncf %59 : vector<16x16xf32> to vector<16x16xbf16>
    %61 = arith.truncf %57 : vector<16x128xf32> to vector<16x128xbf16>
    %cst_40 = arith.constant dense<0.000000e+00> : vector<16x128xf32>
    %62 = tpu.matmul %60, %61, %cst_40 {dimension_numbers = #tpu.dot_dimension_numbers<[1], [0], [0], [1], [0, 0, 1, 1], [], []>} : vector<16x16xbf16>, vector<16x128xbf16>, vector<16x128xf32> -> vector<16x128xf32>
    %c2_41 = arith.constant 2 : index
    %c0_42 = arith.constant 0 : index
    %c0_43 = arith.constant 0 : index
    %63 = vector.load %arg8[%c2_41, %c0_42, %c0_43] : memref<3x16x128xf32, #tpu.memory_space<vmem>>, vector<1x16x128xf32>
    %64 = vector.shape_cast %63 : vector<1x16x128xf32> to vector<16x128xf32>
    %65 = arith.addf %62, %64 : vector<16x128xf32>
    %c32 = arith.constant 32 : index
    %c0_44 = arith.constant 0 : index
    %66 = vector.load %arg12[%c32, %c0_44] : memref<48x128xf32, #tpu.memory_space<vmem>>, vector<16x128xf32>
    tpu.vector_store %arg12[%c32, %c0_44], %65 {strides = array<i32>} : memref<48x128xf32, #tpu.memory_space<vmem>>, vector<16x128xf32>,
    %67 = arith.mulf %39, %52 : vector<16x128xf32>
    %68 = arith.negf %67 : vector<16x128xf32>
    %69 = math.exp %68 : vector<16x128xf32>
    %cst_45 = arith.constant 1.000000e+00 : f32
    %70 = vector.broadcast %cst_45 : f32 to vector<16x128xf32>
    %71 = arith.addf %70, %69 : vector<16x128xf32>
    %72 = arith.divf %70, %71 : vector<16x128xf32>
    %c0_46 = arith.constant 0 : index
    %c0_47 = arith.constant 0 : index
    %73 = vector.load %arg13[%c0_46, %c0_47] : memref<16x128xf32, #tpu.memory_space<vmem>>, vector<16x128xf32>
    tpu.vector_store %arg13[%c0_46, %c0_47], %72 {strides = array<i32>} : memref<16x128xf32, #tpu.memory_space<vmem>>, vector<16x128xf32>,
    %74 = arith.truncf %72 : vector<16x128xf32> to vector<16x128xbf16>
    %cst_48 = arith.constant dense<0.000000e+00> : vector<16x8xf32>
    %75 = tpu.matmul %74, %7, %cst_48 {dimension_numbers = #tpu.dot_dimension_numbers<[1], [0], [0], [1], [0, 0, 1, 1], [], []>} : vector<16x128xbf16>, vector<128x8xbf16>, vector<16x8xf32> -> vector<16x8xf32>
    %c0_49 = arith.constant 0 : index
    %c0_50 = arith.constant 0 : index
    %76 = vector.load %arg10[%c0_49, %c0_50] : memref<1x8xf32, #tpu.memory_space<vmem>>, vector<1x8xf32>
    %77 = vector.broadcast %76 : vector<1x8xf32> to vector<16x8xf32>
    %78 = arith.addf %75, %77 : vector<16x8xf32>
    %c0_51 = arith.constant 0 : index
    %c0_52 = arith.constant 0 : index
    %79 = vector.load %arg14[%c0_51, %c0_52] : memref<16x8xf32, #tpu.memory_space<vmem>>, vector<16x8xf32>
    tpu.vector_store %arg14[%c0_51, %c0_52], %78 {strides = array<i32>} : memref<16x8xf32, #tpu.memory_space<vmem>>, vector<16x8xf32>,
    return
  }
}

</mosaic_0001>

<llo_original>
// kernel: mul.15
$region0: #{mul.15}
  %s0 = inlined_call_operand.vmem [shape: f32[3,16], index: 0, kind: input, shape index: {}]
  %s1 = inlined_call_operand.vmem [shape: f32[48], index: 1, kind: output, shape index: {}]
  $region1: #{mul.15} parent=0
    #allocation0 [shape = 'u8[4096]{0}', space=vmem, size = 0x1000, scoped, tag = 'scoped mem for output reshape']
    #allocation1 [shape = 'u8[4096]{0}', space=vmem, size = 0x1000, scoped, tag = 'scoped mem for input reshape']
    %s3 = sshllo.u32 0, 4
    %v4 = vld [vmem:[%s0] sm:%s3]
    %5 = vst [vmem:[#allocation1] sm:%s3] %v4
    %v6 = vld [vmem:[#allocation1] sm:$0x1]
    %vm7 = vcmask 130048
    %8 = vst.msk [vmem:[#allocation0] sm:$0x1] %vm7, %v6
    %s9 = scalar_lea.vmem [#allocation1], 2
    %v10 = vld [vmem:[%s9] sm:$0x1]
    %11 = vrot.lane.b32.xlu0 %v10, 32
    %v12 = vpop.permute.xlu0 %11
    %vm13 = vcmask 392448
    %14 = vst.msk [vmem:[#allocation0] sm:$0x1] %vm13, %v12
    %s15 = scalar_lea.vmem [#allocation1], 1
    %v16 = vld [vmem:[%s15] sm:$0x1]
    %17 = vrot.lane.b32.xlu0 %v16, 16
    %v18 = vpop.permute.xlu0 %17
    %vm19 = vcmask 261248
    %20 = vst.msk [vmem:[#allocation0] sm:$0x1] %vm19, %v18
    %s22 = sshllo.u32 0, 1
    %v24 = vld [vmem:[#allocation0] sm:%s22]
    %s25 = sshllo.u32 0, 1
    %26 = vst [vmem:[%s1] sm:%s25] %v24

// kernel: net_forward.1
$region0: #{net_forward.1}
  #allocation0 [shape = 'u32[]', space=smem, size = 0x4, offset = 0x4, fixed_abs, tag = 'smem constant byte address 0x4 - core index']
  #allocation1 [shape = 'u32[144,128]{1,0:T(1,128)}', space=vmem, size = 0x12000, scoped, tag = 'internal scratch']
  %s0 = inlined_call_operand.vmem [shape: f32[48,48], index: 0, kind: input, shape index: {}]
  %s1 = inlined_call_operand.vmem [shape: f32[3,16,16], index: 1, kind: input, shape index: {}]
  %s2 = inlined_call_operand.vmem [shape: f32[48,8], index: 2, kind: input, shape index: {}]
  %s3 = inlined_call_operand.vmem [shape: f32[8,128], index: 3, kind: input, shape index: {}]
  %s4 = inlined_call_operand.vmem [shape: f32[1,128], index: 4, kind: input, shape index: {}]
  %s5 = inlined_call_operand.vmem [shape: f32[128,128], index: 5, kind: input, shape index: {}]
  %s6 = inlined_call_operand.vmem [shape: f32[48,128], index: 6, kind: input, shape index: {}]
  %s7 = inlined_call_operand.vmem [shape: f32[128,128], index: 7, kind: input, shape index: {}]
  %s8 = inlined_call_operand.vmem [shape: f32[3,16,128], index: 8, kind: input, shape index: {}]
  %s9 = inlined_call_operand.vmem [shape: f32[128,8], index: 9, kind: input, shape index: {}]
  %s10 = inlined_call_operand.vmem [shape: f32[1,8], index: 10, kind: input, shape index: {}]
  %s11 = inlined_call_operand.hbm [shape: f32[48,128], index: 11, kind: output, shape index: {0}]
  %s12 = inlined_call_operand.hbm [shape: f32[48,128], index: 12, kind: output, shape index: {1}]
  %s13 = inlined_call_operand.hbm [shape: f32[16,128], index: 13, kind: output, shape index: {2}]
  %s14 = inlined_call_operand.vmem [shape: f32[16,8], index: 14, kind: output, shape index: {3}]
  %15 = xla_tuple %s11, %s12, %s13, %s14
  %s16 = sld [smem:[#allocation0]]
  $region78: #{net_forward.1} parent=0
    _
  %s18 = ssub.s32 1, %s16
  %s19 = scalar_select 0, %s18, %s16
  $region1: #{net_forward.1} parent=0
    #allocation2 [shape = 'u8[24576]{0}', space=vmem, size = 0x6000, scoped, tag = 'output window, operand 0, single buffered']
    #allocation3 [shape = 's32[1]{0}', space=sflag, size = 0x4, scoped, tag = 'scoped memory for net_forward.1']
    #allocation4 [shape = 'u8[24576]{0}', space=vmem, size = 0x6000, scoped, tag = 'output window, operand 1, single buffered']
    #allocation5 [shape = 's32[1]{0}', space=sflag, size = 0x4, scoped, tag = 'scoped memory for net_forward.1']
    #allocation6 [shape = 'u8[8192]{0}', space=vmem, size = 0x2000, scoped, tag = 'output window, operand 2, single buffered']
    %20 = vsyncpa [#allocation3], 0
    %21 = vsyncpa [#allocation5], 0
    // Predicated region
    $region2: #{net_forward.1} parent=1 // pred_check
      _
    $region3: #{net_forward.1} parent=1 // pred_check_branch
      %23 = sbr.rel (0) target = $region5
    $region4: #{net_forward.1} parent=1 // pred_region
      _
    $region5: #{net_forward.1} parent=1 // pred_fallthru
      _
    // Predicated region
    $region6: #{net_forward.1} parent=1 // pred_check
      _
    $region7: #{net_forward.1} parent=1 // pred_check_branch
      %25 = sbr.rel (0) target = $region9
    $region8: #{net_forward.1} parent=1 // pred_region
      _
    $region9: #{net_forward.1} parent=1 // pred_fallthru
      _
    // Predicated region
    $region10: #{net_forward.1} parent=1 // pred_check
      _
    $region11: #{net_forward.1} parent=1 // pred_check_branch
      %27 = sbr.rel (0) target = $region13
    $region12: #{net_forward.1} parent=1 // pred_region
      _
    $region13: #{net_forward.1} parent=1 // pred_fallthru
      _
    // Predicated region
    $region14: #{net_forward.1} parent=1 // pred_check
      _
    $region15: #{net_forward.1} parent=1 // pred_check_branch
      %29 = sbr.rel (0) target = $region17
    $region16: #{net_forward.1} parent=1 // pred_region
      _
    $region17: #{net_forward.1} parent=1 // pred_fallthru
      _
    // Predicated region
    $region18: #{net_forward.1} parent=1 // pred_check
      _
    $region19: #{net_forward.1} parent=1 // pred_check_branch
      %31 = sbr.rel (0) target = $region21
    $region20: #{net_forward.1} parent=1 // pred_region
      _
    $region21: #{net_forward.1} parent=1 // pred_fallthru
      _
    // Predicated region
    $region22: #{net_forward.1} parent=1 // pred_check
      _
    $region23: #{net_forward.1} parent=1 // pred_check_branch
      %33 = sbr.rel (0) target = $region25
    $region24: #{net_forward.1} parent=1 // pred_region
      _
    $region25: #{net_forward.1} parent=1 // pred_fallthru
      _
    // Predicated region
    $region26: #{net_forward.1} parent=1 // pred_check
      _
    $region27: #{net_forward.1} parent=1 // pred_check_branch
      %35 = sbr.rel (0) target = $region29
    $region28: #{net_forward.1} parent=1 // pred_region
      _
    $region29: #{net_forward.1} parent=1 // pred_fallthru
      _
    // Predicated region
    $region30: #{net_forward.1} parent=1 // pred_check
      _
    $region31: #{net_forward.1} parent=1 // pred_check_branch
      %37 = sbr.rel (0) target = $region33
    $region32: #{net_forward.1} parent=1 // pred_region
      _
    $region33: #{net_forward.1} parent=1 // pred_fallthru
      _
    // Predicated region
    $region34: #{net_forward.1} parent=1 // pred_check
      _
    $region35: #{net_forward.1} parent=1 // pred_check_branch
      %39 = sbr.rel (0) target = $region37
    $region36: #{net_forward.1} parent=1 // pred_region
      _
    $region37: #{net_forward.1} parent=1 // pred_fallthru
      _
    // Predicated region
    $region38: #{net_forward.1} parent=1 // pred_check
      _
    $region39: #{net_forward.1} parent=1 // pred_check_branch
      %41 = sbr.rel (0) target = $region41
    $region40: #{net_forward.1} parent=1 // pred_region
      _
    $region41: #{net_forward.1} parent=1 // pred_fallthru
      _
    // Predicated region
    $region42: #{net_forward.1} parent=1 // pred_check
      _
    $region43: #{net_forward.1} parent=1 // pred_check_branch
      %43 = sbr.rel (0) target = $region45
    $region44: #{net_forward.1} parent=1 // pred_region
      _
    $region45: #{net_forward.1} parent=1 // pred_fallthru
      _
    %v45 = vld [vmem:[%s3] sm:$0xff]
    %v46 = vpack.c.bf16 %v45, %v45
    %v47 = vld [vmem:[%s5] sm:$0xff]
    %v48 = vld [vmem:[%s5 + $0x8] sm:$0xff]
    %v49 = vld [vmem:[%s5 + $0x10] sm:$0xff]
    %v50 = vld [vmem:[%s5 + $0x18] sm:$0xff]
    %v51 = vld [vmem:[%s5 + $0x20] sm:$0xff]
    %v52 = vld [vmem:[%s5 + $0x28] sm:$0xff]
    %v53 = vld [vmem:[%s5 + $0x30] sm:$0xff]
    %v54 = vld [vmem:[%s5 + $0x38] sm:$0xff]
    %v55 = vld [vmem:[%s5 + $0x40] sm:$0xff]
    %v56 = vld [vmem:[%s5 + $0x48] sm:$0xff]
    %v57 = vld [vmem:[%s5 + $0x50] sm:$0xff]
    %v58 = vld [vmem:[%s5 + $0x58] sm:$0xff]
    %v59 = vld [vmem:[%s5 + $0x60] sm:$0xff]
    %v60 = vld [vmem:[%s5 + $0x68] sm:$0xff]
    %v61 = vld [vmem:[%s5 + $0x70] sm:$0xff]
    %v62 = vld [vmem:[%s5 + $0x78] sm:$0xff]
    %v63 = vpack.c.bf16 %v48, %v47
    %v64 = vpack.c.bf16 %v50, %v49
    %v65 = vpack.c.bf16 %v52, %v51
    %v66 = vpack.c.bf16 %v54, %v53
    %v67 = vpack.c.bf16 %v56, %v55
    %v68 = vpack.c.bf16 %v58, %v57
    %v69 = vpack.c.bf16 %v60, %v59
    %v70 = vpack.c.bf16 %v62, %v61
    %v71 = vld [vmem:[%s7] sm:$0xff]
    %v72 = vld [vmem:[%s7 + $0x8] sm:$0xff]
    %v73 = vld [vmem:[%s7 + $0x10] sm:$0xff]
    %v74 = vld [vmem:[%s7 + $0x18] sm:$0xff]
    %v75 = vld [vmem:[%s7 + $0x20] sm:$0xff]
    %v76 = vld [vmem:[%s7 + $0x28] sm:$0xff]
    %v77 = vld [vmem:[%s7 + $0x30] sm:$0xff]
    %v78 = vld [vmem:[%s7 + $0x38] sm:$0xff]
    %v79 = vld [vmem:[%s7 + $0x40] sm:$0xff]
    %v80 = vld [vmem:[%s7 + $0x48] sm:$0xff]
    %v81 = vld [vmem:[%s7 + $0x50] sm:$0xff]
    %v82 = vld [vmem:[%s7 + $0x58] sm:$0xff]
    %v83 = vld [vmem:[%s7 + $0x60] sm:$0xff]
    %v84 = vld [vmem:[%s7 + $0x68] sm:$0xff]
    %v85 = vld [vmem:[%s7 + $0x70] sm:$0xff]
    %v86 = vld [vmem:[%s7 + $0x78] sm:$0xff]
    %v87 = vpack.c.bf16 %v72, %v71
    %v88 = vpack.c.bf16 %v74, %v73
    %v89 = vpack.c.bf16 %v76, %v75
    %v90 = vpack.c.bf16 %v78, %v77
    %v91 = vpack.c.bf16 %v80, %v79
    %v92 = vpack.c.bf16 %v82, %v81
    %v93 = vpack.c.bf16 %v84, %v83
    %v94 = vpack.c.bf16 %v86, %v85
    %v95 = vld [vmem:[%s9] sm:$0xff]
    %v96 = vld [vmem:[%s9 + $0x8] sm:$0xff]
    %v97 = vld [vmem:[%s9 + $0x10] sm:$0xff]
    %v98 = vld [vmem:[%s9 + $0x18] sm:$0xff]
    %v99 = vld [vmem:[%s9 + $0x20] sm:$0xff]
    %v100 = vld [vmem:[%s9 + $0x28] sm:$0xff]
    %v101 = vld [vmem:[%s9 + $0x30] sm:$0xff]
    %v102 = vld [vmem:[%s9 + $0x38] sm:$0xff]
    %v103 = vld [vmem:[%s9 + $0x40] sm:$0xff]
    %v104 = vld [vmem:[%s9 + $0x48] sm:$0xff]
    %v105 = vld [vmem:[%s9 + $0x50] sm:$0xff]
    %v106 = vld [vmem:[%s9 + $0x58] sm:$0xff]
    %v107 = vld [vmem:[%s9 + $0x60] sm:$0xff]
    %v108 = vld [vmem:[%s9 + $0x68] sm:$0xff]
    %v109 = vld [vmem:[%s9 + $0x70] sm:$0xff]
    %v110 = vld [vmem:[%s9 + $0x78] sm:$0xff]
    %v111 = vpack.c.bf16 %v96, %v95
    %v112 = vpack.c.bf16 %v98, %v97
    %v113 = vpack.c.bf16 %v100, %v99
    %v114 = vpack.c.bf16 %v102, %v101
    %v115 = vpack.c.bf16 %v104, %v103
    %v116 = vpack.c.bf16 %v106, %v105
    %v117 = vpack.c.bf16 %v108, %v107
    %v118 = vpack.c.bf16 %v110, %v109
    %v119 = vld [vmem:[%s0] sm:$0xff]
    %v120 = vld [vmem:[%s0 + $0x8] sm:$0xff]
    %v121 = vld [vmem:[%s0 + $0x10] sm:$0xff]
    %v122 = vld [vmem:[%s0 + $0x18] sm:$0xff]
    %v123 = vld [vmem:[%s0 + $0x20] sm:$0xff]
    %v124 = vld [vmem:[%s0 + $0x28] sm:$0xff]
    %v125 = vpack.c.bf16 %v120, %v119
    %v126 = vpack.c.bf16 %v122, %v121
    %v127 = vpack.c.bf16 %v124, %v123
    %v128 = vld [vmem:[%s4] sm:$0x1]
    %v130 = vlaneseq
    %v131 = vshrl.u32 %v130, 7
    %v132 = vsub.s32 0, %v131
    %v133 = vrot.slane %v128, %v132
    %v135 = vld [vmem:[%s2] sm:$0xff]
    %v136 = vld [vmem:[%s2 + $0x8] sm:$0xff]
    %v137 = vld [vmem:[%s2 + $0x10] sm:$0xff]
    %v138 = vld [vmem:[%s2 + $0x18] sm:$0xff]
    %v139 = vld [vmem:[%s2 + $0x20] sm:$0xff]
    %v140 = vld [vmem:[%s2 + $0x28] sm:$0xff]
    %v141 = vpack.c.bf16 %v136, %v135
    %v142 = vpack.c.bf16 %v138, %v137
    %v143 = vpack.c.bf16 %v140, %v139
    %vm144 = vcmask 64512
    %v146 = vsel %vm144, %v141, 0
    %v149 = vsel %vm144, %v142, 0
    %v152 = vsel %vm144, %v143, 0
    %vm154 = vcmask 1043456
    %v156 = vsel %vm154, %v46, 0
    %158 = vmatprep.subr.bf16.mxu0 0
    %159 = vmatpush1.bf16.msra.mxu0 %v156
    %160 = vmatprep.subr.bf16.mxu0 0
    %161 = vmatpush1.bf16.msra.mxu0 0
    %162 = vmatprep.subr.bf16.mxu0 0
    %163 = vmatpush1.bf16.msra.mxu0 0
    %164 = vmatprep.subr.bf16.mxu0 0
    %165 = vmatpush1.bf16.msra.mxu0 0
    %166 = vmatprep.subr.bf16.mxu0 0
    %167 = vmatpush1.bf16.msra.mxu0 0
    %168 = vmatprep.subr.bf16.mxu0 0
    %169 = vmatpush1.bf16.msra.mxu0 0
    %170 = vmatprep.subr.bf16.mxu0 0
    %171 = vmatpush1.bf16.msra.mxu0 0
    %172 = vmatprep.subr.bf16.mxu0 0
    %173 = vmatpush1.bf16.msra.mxu0 0
    %174 = vmatprep.subr.bf16.mxu0 0
    %175 = vmatpush1.bf16.msra.mxu0 0
    %176 = vmatprep.subr.bf16.mxu0 0
    %177 = vmatpush1.bf16.msra.mxu0 0
    %178 = vmatprep.subr.bf16.mxu0 0
    %179 = vmatpush1.bf16.msra.mxu0 0
    %180 = vmatprep.subr.bf16.mxu0 0
    %181 = vmatpush1.bf16.msra.mxu0 0
    %182 = vmatprep.subr.bf16.mxu0 0
    %183 = vmatpush1.bf16.msra.mxu0 0
    %184 = vmatprep.subr.bf16.mxu0 0
    %185 = vmatpush1.bf16.msra.mxu0 0
    %186 = vmatprep.subr.bf16.mxu0 0
    %187 = vmatpush1.bf16.msra.mxu0 0
    %188 = vmatprep.subr.bf16.mxu0 0
    %189 = vmatpush1.bf16.msra.mxu0 0
    %190 = vmatprep.mubr.bf16.mxu0 0
    %191 = vmatmul.mubr.bf16.gmra.mrb[0].mxu0 %v146
    %v192 = vpop.f32.mrb[0].mxu0
    %v193 = vadd.f32 %v133, %v192
    %v194 = vpop.f32.mrb[0].mxu0
    %v195 = vpop.f32.mrb[0].mxu0
    %v196 = vadd.f32 %v133, %v195
    %v197 = vpop.f32.mrb[0].mxu0
    %198 = vmatprep.mubr.bf16.mxu0 0
    %199 = vmatmul.mubr.bf16.gmra.mrb[0].mxu0 %v149
    %v200 = vpop.f32.mrb[0].mxu0
    %v201 = vadd.f32 %v133, %v200
    %v202 = vpop.f32.mrb[0].mxu0
    %v203 = vpop.f32.mrb[0].mxu0
    %v204 = vadd.f32 %v133, %v203
    %v205 = vpop.f32.mrb[0].mxu0
    %206 = vmatprep.mubr.bf16.mxu0 0
    %207 = vmatmul.mubr.bf16.gmra.mrb[0].mxu0 %v152
    %v208 = vpop.f32.mrb[0].mxu0
    %v209 = vadd.f32 %v133, %v208
    %v210 = vpop.f32.mrb[0].mxu0
    %v211 = vpop.f32.mrb[0].mxu0
    %v212 = vadd.f32 %v133, %v211
    %v213 = vpop.f32.mrb[0].mxu0
    %214 = vdwg.mxu0
    %215 = vst [vmem:[#allocation2] sm:$0xff] %v193
    %216 = vst [vmem:[#allocation2 + $0x8] sm:$0xff] %v196
    %217 = vst [vmem:[#allocation2 + $0x10] sm:$0xff] %v201
    %218 = vst [vmem:[#allocation2 + $0x18] sm:$0xff] %v204
    %219 = vst [vmem:[#allocation2 + $0x20] sm:$0xff] %v209
    %220 = vst [vmem:[#allocation2 + $0x28] sm:$0xff] %v212
    %v221 = vpack.c.bf16 %v196, %v193
    %v222 = vpack.c.bf16 %v204, %v201
    %v223 = vpack.c.bf16 %v212, %v209
    %224 = vmatprep.subr.bf16.mxu0 0
    %225 = vmatpush1.bf16.msra.mxu0 %v63
    %226 = vmatprep.subr.bf16.mxu0 0
    %227 = vmatpush1.bf16.msra.mxu0 %v64
    %228 = vmatprep.subr.bf16.mxu0 0
    %229 = vmatpush1.bf16.msra.mxu0 %v65
    %230 = vmatprep.subr.bf16.mxu0 0
    %231 = vmatpush1.bf16.msra.mxu0 %v66
    %232 = vmatprep.subr.bf16.mxu0 0
    %233 = vmatpush1.bf16.msra.mxu0 %v67
    %234 = vmatprep.subr.bf16.mxu0 0
    %235 = vmatpush1.bf16.msra.mxu0 %v68
    %236 = vmatprep.subr.bf16.mxu0 0
    %237 = vmatpush1.bf16.msra.mxu0 %v69
    %238 = vmatprep.subr.bf16.mxu0 0
    %239 = vmatpush1.bf16.msra.mxu0 %v70
    %240 = vmatprep.subr.bf16.mxu0 0
    %241 = vmatpush1.bf16.msra.mxu0 0
    %242 = vmatprep.subr.bf16.mxu0 0
    %243 = vmatpush1.bf16.msra.mxu0 0
    %244 = vmatprep.subr.bf16.mxu0 0
    %245 = vmatpush1.bf16.msra.mxu0 0
    %246 = vmatprep.subr.bf16.mxu0 0
    %247 = vmatpush1.bf16.msra.mxu0 0
    %248 = vmatprep.subr.bf16.mxu0 0
    %249 = vmatpush1.bf16.msra.mxu0 0
    %250 = vmatprep.subr.bf16.mxu0 0
    %251 = vmatpush1.bf16.msra.mxu0 0
    %252 = vmatprep.subr.bf16.mxu0 0
    %253 = vmatpush1.bf16.msra.mxu0 0
    %254 = vmatprep.subr.bf16.mxu0 0
    %255 = vmatpush1.bf16.msra.mxu0 0
    %256 = vmatprep.mubr.bf16.mxu0 0
    %257 = vmatmul.mubr.bf16.gmra.mrb[0].mxu0 %v221
    %v258 = vpop.f32.mrb[0].mxu0
    %v259 = vadd.f32 0.0, %v258
    %v260 = vpop.f32.mrb[0].mxu0
    %v261 = vpop.f32.mrb[0].mxu0
    %v262 = vadd.f32 0.0, %v261
    %v263 = vpop.f32.mrb[0].mxu0
    %264 = vmatprep.mubr.bf16.mxu0 0
    %265 = vmatmul.mubr.bf16.gmra.mrb[0].mxu0 %v222
    %v266 = vpop.f32.mrb[0].mxu0
    %v267 = vadd.f32 0.0, %v266
    %v268 = vpop.f32.mrb[0].mxu0
    %v269 = vpop.f32.mrb[0].mxu0
    %v270 = vadd.f32 0.0, %v269
    %v271 = vpop.f32.mrb[0].mxu0
    %272 = vmatprep.mubr.bf16.mxu0 0
    %273 = vmatmul.mubr.bf16.gmra.mrb[0].mxu0 %v223
    %v274 = vpop.f32.mrb[0].mxu0
    %v275 = vadd.f32 0.0, %v274
    %v276 = vpop.f32.mrb[0].mxu0
    %v277 = vpop.f32.mrb[0].mxu0
    %v278 = vadd.f32 0.0, %v277
    %v279 = vpop.f32.mrb[0].mxu0
    %280 = vdwg.mxu0
    %v281 = vpack.c.bf16 %v262, %v259
    %v282 = vpack.c.bf16 %v270, %v267
    %v283 = vpack.c.bf16 %v278, %v275
    %v284 = vld [vmem:[%s6] sm:$0xff]
    %v285 = vld [vmem:[%s6 + $0x8] sm:$0xff]
    %v286 = vld [vmem:[%s6 + $0x10] sm:$0xff]
    %v287 = vld [vmem:[%s6 + $0x18] sm:$0xff]
    %v288 = vld [vmem:[%s6 + $0x20] sm:$0xff]
    %v289 = vld [vmem:[%s6 + $0x28] sm:$0xff]
    %vm290 = vcmask 392192
    %v292 = vsel %vm290, %v125, 0
    %v295 = vsel %vm290, %v126, 0
    %v298 = vsel %vm290, %v127, 0
    %300 = vmatprep.subr.bf16.mxu0 0
    %301 = vmatpush1.bf16.msra.mxu0 %v281
    %302 = vmatprep.subr.bf16.mxu0 0
    %303 = vmatpush1.bf16.msra.mxu0 %v282
    %304 = vmatprep.subr.bf16.mxu0 0
    %305 = vmatpush1.bf16.msra.mxu0 %v283
    %306 = vmatprep.subr.bf16.mxu0 0
    %307 = vmatpush1.bf16.msra.mxu0 0
    %308 = vmatprep.subr.bf16.mxu0 0
    %309 = vmatpush1.bf16.msra.mxu0 0
    %310 = vmatprep.subr.bf16.mxu0 0
    %311 = vmatpush1.bf16.msra.mxu0 0
    %312 = vmatprep.subr.bf16.mxu0 0
    %313 = vmatpush1.bf16.msra.mxu0 0
    %314 = vmatprep.subr.bf16.mxu0 0
    %315 = vmatpush1.bf16.msra.mxu0 0
    %316 = vmatprep.subr.bf16.mxu0 0
    %317 = vmatpush1.bf16.msra.mxu0 0
    %318 = vmatprep.subr.bf16.mxu0 0
    %319 = vmatpush1.bf16.msra.mxu0 0
    %320 = vmatprep.subr.bf16.mxu0 0
    %321 = vmatpush1.bf16.msra.mxu0 0
    %322 = vmatprep.subr.bf16.mxu0 0
    %323 = vmatpush1.bf16.msra.mxu0 0
    %324 = vmatprep.subr.bf16.mxu0 0
    %325 = vmatpush1.bf16.msra.mxu0 0
    %326 = vmatprep.subr.bf16.mxu0 0
    %327 = vmatpush1.bf16.msra.mxu0 0
    %328 = vmatprep.subr.bf16.mxu0 0
    %329 = vmatpush1.bf16.msra.mxu0 0
    %330 = vmatprep.subr.bf16.mxu0 0
    %331 = vmatpush1.bf16.msra.mxu0 0
    %332 = vmatprep.mubr.bf16.mxu0 0
    %333 = vmatmul.mubr.bf16.gmra.mrb[0].mxu0 %v292
    %v334 = vpop.f32.mrb[0].mxu0
    %v335 = vadd.f32 %v284, %v334
    %v336 = vpop.f32.mrb[0].mxu0
    %v337 = vpop.f32.mrb[0].mxu0
    %v338 = vadd.f32 %v285, %v337
    %v339 = vpop.f32.mrb[0].mxu0
    %340 = vmatprep.mubr.bf16.mxu0 0
    %341 = vmatmul.mubr.bf16.gmra.mrb[0].mxu0 %v295
    %v342 = vpop.f32.mrb[0].mxu0
    %v343 = vadd.f32 %v286, %v342
    %v344 = vpop.f32.mrb[0].mxu0
    %v345 = vpop.f32.mrb[0].mxu0
    %v346 = vadd.f32 %v287, %v345
    %v347 = vpop.f32.mrb[0].mxu0
    %348 = vmatprep.mubr.bf16.mxu0 0
    %349 = vmatmul.mubr.bf16.gmra.mrb[0].mxu0 %v298
    %v350 = vpop.f32.mrb[0].mxu0
    %v351 = vadd.f32 %v288, %v350
    %v352 = vpop.f32.mrb[0].mxu0
    %v353 = vpop.f32.mrb[0].mxu0
    %v354 = vadd.f32 %v289, %v353
    %v355 = vpop.f32.mrb[0].mxu0
    %356 = vdwg.mxu0
    %v357 = vadd.f32 %v335, %v343
    %v358 = vadd.f32 %v338, %v346
    %v359 = vadd.f32 %v357, %v351
    %v360 = vadd.f32 %v358, %v354
    %v361 = vsub.f32 %v359, %v335
    %v362 = vsub.f32 %v360, %v338
    %v363 = vpack.c.bf16 %v362, %v361
    %364 = vmatprep.subr.bf16.mxu0 0
    %365 = vmatpush1.bf16.msra.mxu0 %v87
    %366 = vmatprep.subr.bf16.mxu0 0
    %367 = vmatpush1.bf16.msra.mxu0 %v88
    %368 = vmatprep.subr.bf16.mxu0 0
    %369 = vmatpush1.bf16.msra.mxu0 %v89
    %370 = vmatprep.subr.bf16.mxu0 0
    %371 = vmatpush1.bf16.msra.mxu0 %v90
    %372 = vmatprep.subr.bf16.mxu0 0
    %373 = vmatpush1.bf16.msra.mxu0 %v91
    %374 = vmatprep.subr.bf16.mxu0 0
    %375 = vmatpush1.bf16.msra.mxu0 %v92
    %376 = vmatprep.subr.bf16.mxu0 0
    %377 = vmatpush1.bf16.msra.mxu0 %v93
    %378 = vmatprep.subr.bf16.mxu0 0
    %379 = vmatpush1.bf16.msra.mxu0 %v94
    %380 = vmatprep.subr.bf16.mxu0 0
    %381 = vmatpush1.bf16.msra.mxu0 0
    %382 = vmatprep.subr.bf16.mxu0 0
    %383 = vmatpush1.bf16.msra.mxu0 0
    %384 = vmatprep.subr.bf16.mxu0 0
    %385 = vmatpush1.bf16.msra.mxu0 0
    %386 = vmatprep.subr.bf16.mxu0 0
    %387 = vmatpush1.bf16.msra.mxu0 0
    %388 = vmatprep.subr.bf16.mxu0 0
    %389 = vmatpush1.bf16.msra.mxu0 0
    %390 = vmatprep.subr.bf16.mxu0 0
    %391 = vmatpush1.bf16.msra.mxu0 0
    %392 = vmatprep.subr.bf16.mxu0 0
    %393 = vmatpush1.bf16.msra.mxu0 0
    %394 = vmatprep.subr.bf16.mxu0 0
    %395 = vmatpush1.bf16.msra.mxu0 0
    %396 = vmatprep.mubr.bf16.mxu0 0
    %397 = vmatmul.mubr.bf16.gmra.mrb[0].mxu0 %v363
    %v398 = vpop.f32.mrb[0].mxu0
    %v399 = vadd.f32 0.0, %v398
    %v400 = vpop.f32.mrb[0].mxu0
    %v401 = vpop.f32.mrb[0].mxu0
    %v402 = vadd.f32 0.0, %v401
    %v403 = vpop.f32.mrb[0].mxu0
    %404 = vdwg.mxu0
    %v405 = vld [vmem:[%s1] sm:$0xff]
    %v406 = vld [vmem:[%s1 + $0x8] sm:$0xff]
    %v407 = vpack.c.bf16 %v406, %v405
    %v408 = vpack.c.bf16 %v402, %v399
    %v409 = vld [vmem:[%s8] sm:$0xff]
    %v410 = vld [vmem:[%s8 + $0x8] sm:$0xff]
    %vm411 = vcmask 130048
    %v413 = vsel %vm411, %v407, 0
    %415 = vmatprep.subr.bf16.mxu0 0
    %416 = vmatpush1.bf16.msra.mxu0 %v408
    %417 = vmatprep.subr.bf16.mxu0 0
    %418 = vmatpush1.bf16.msra.mxu0 0
    %419 = vmatprep.subr.bf16.mxu0 0
    %420 = vmatpush1.bf16.msra.mxu0 0
    %421 = vmatprep.subr.bf16.mxu0 0
    %422 = vmatpush1.bf16.msra.mxu0 0
    %423 = vmatprep.subr.bf16.mxu0 0
    %424 = vmatpush1.bf16.msra.mxu0 0
    %425 = vmatprep.subr.bf16.mxu0 0
    %426 = vmatpush1.bf16.msra.mxu0 0
    %427 = vmatprep.subr.bf16.mxu0 0
    %428 = vmatpush1.bf16.msra.mxu0 0
    %429 = vmatprep.subr.bf16.mxu0 0
    %430 = vmatpush1.bf16.msra.mxu0 0
    %431 = vmatprep.subr.bf16.mxu0 0
    %432 = vmatpush1.bf16.msra.mxu0 0
    %433 = vmatprep.subr.bf16.mxu0 0
    %434 = vmatpush1.bf16.msra.mxu0 0
    %435 = vmatprep.subr.bf16.mxu0 0
    %436 = vmatpush1.bf16.msra.mxu0 0
    %437 = vmatprep.subr.bf16.mxu0 0
    %438 = vmatpush1.bf16.msra.mxu0 0
    %439 = vmatprep.subr.bf16.mxu0 0
    %440 = vmatpush1.bf16.msra.mxu0 0
    %441 = vmatprep.subr.bf16.mxu0 0
    %442 = vmatpush1.bf16.msra.mxu0 0
    %443 = vmatprep.subr.bf16.mxu0 0
    %444 = vmatpush1.bf16.msra.mxu0 0
    %445 = vmatprep.subr.bf16.mxu0 0
    %446 = vmatpush1.bf16.msra.mxu0 0
    %447 = vmatprep.mubr.bf16.mxu0 0
    %448 = vmatmul.mubr.bf16.gmra.mrb[0].mxu0 %v413
    %v449 = vpop.f32.mrb[0].mxu0
    %v450 = vadd.f32 %v409, %v449
    %v451 = vpop.f32.mrb[0].mxu0
    %v452 = vpop.f32.mrb[0].mxu0
    %v453 = vadd.f32 %v410, %v452
    %v454 = vpop.f32.mrb[0].mxu0
    %455 = vdwg.mxu0
    %v456 = vadd.f32 %v361, %v450
    %v457 = vadd.f32 %v362, %v453
    %458 = vst [vmem:[#allocation4] sm:$0xff] %v450
    %459 = vst [vmem:[#allocation4 + $0x8] sm:$0xff] %v453
    %v460 = vsub.f32 %v456, %v343
    %v461 = vsub.f32 %v457, %v346
    %v462 = vpack.c.bf16 %v461, %v460
    %463 = vmatprep.subr.bf16.mxu0 0
    %464 = vmatpush1.bf16.msra.mxu0 %v87
    %465 = vmatprep.subr.bf16.mxu0 0
    %466 = vmatpush1.bf16.msra.mxu0 %v88
    %467 = vmatprep.subr.bf16.mxu0 0
    %468 = vmatpush1.bf16.msra.mxu0 %v89
    %469 = vmatprep.subr.bf16.mxu0 0
    %470 = vmatpush1.bf16.msra.mxu0 %v90
    %471 = vmatprep.subr.bf16.mxu0 0
    %472 = vmatpush1.bf16.msra.mxu0 %v91
    %473 = vmatprep.subr.bf16.mxu0 0
    %474 = vmatpush1.bf16.msra.mxu0 %v92
    %475 = vmatprep.subr.bf16.mxu0 0
    %476 = vmatpush1.bf16.msra.mxu0 %v93
    %477 = vmatprep.subr.bf16.mxu0 0
    %478 = vmatpush1.bf16.msra.mxu0 %v94
    %479 = vmatprep.subr.bf16.mxu0 0
    %480 = vmatpush1.bf16.msra.mxu0 0
    %481 = vmatprep.subr.bf16.mxu0 0
    %482 = vmatpush1.bf16.msra.mxu0 0
    %483 = vmatprep.subr.bf16.mxu0 0
    %484 = vmatpush1.bf16.msra.mxu0 0
    %485 = vmatprep.subr.bf16.mxu0 0
    %486 = vmatpush1.bf16.msra.mxu0 0
    %487 = vmatprep.subr.bf16.mxu0 0
    %488 = vmatpush1.bf16.msra.mxu0 0
    %489 = vmatprep.subr.bf16.mxu0 0
    %490 = vmatpush1.bf16.msra.mxu0 0
    %491 = vmatprep.subr.bf16.mxu0 0
    %492 = vmatpush1.bf16.msra.mxu0 0
    %493 = vmatprep.subr.bf16.mxu0 0
    %494 = vmatpush1.bf16.msra.mxu0 0
    %495 = vmatprep.mubr.bf16.mxu0 0
    %496 = vmatmul.mubr.bf16.gmra.mrb[0].mxu0 %v462
    %v497 = vpop.f32.mrb[0].mxu0
    %v498 = vadd.f32 0.0, %v497
    %v499 = vpop.f32.mrb[0].mxu0
    %v500 = vpop.f32.mrb[0].mxu0
    %v501 = vadd.f32 0.0, %v500
    %v502 = vpop.f32.mrb[0].mxu0
    %503 = vdwg.mxu0
    %s504 = scalar_lea.vmem %s1, 16
    %v505 = vld [vmem:[%s504] sm:$0xff]
    %v506 = vld [vmem:[%s504 + $0x8] sm:$0xff]
    %v507 = vpack.c.bf16 %v506, %v505
    %v508 = vpack.c.bf16 %v501, %v498
    %s509 = scalar_lea.vmem %s8, 16
    %v510 = vld [vmem:[%s509] sm:$0xff]
    %v511 = vld [vmem:[%s509 + $0x8] sm:$0xff]
    %v513 = vsel %vm411, %v507, 0
    %515 = vmatprep.subr.bf16.mxu0 0
    %516 = vmatpush1.bf16.msra.mxu0 %v508
    %517 = vmatprep.subr.bf16.mxu0 0
    %518 = vmatpush1.bf16.msra.mxu0 0
    %519 = vmatprep.subr.bf16.mxu0 0
    %520 = vmatpush1.bf16.msra.mxu0 0
    %521 = vmatprep.subr.bf16.mxu0 0
    %522 = vmatpush1.bf16.msra.mxu0 0
    %523 = vmatprep.subr.bf16.mxu0 0
    %524 = vmatpush1.bf16.msra.mxu0 0
    %525 = vmatprep.subr.bf16.mxu0 0
    %526 = vmatpush1.bf16.msra.mxu0 0
    %527 = vmatprep.subr.bf16.mxu0 0
    %528 = vmatpush1.bf16.msra.mxu0 0
    %529 = vmatprep.subr.bf16.mxu0 0
    %530 = vmatpush1.bf16.msra.mxu0 0
    %531 = vmatprep.subr.bf16.mxu0 0
    %532 = vmatpush1.bf16.msra.mxu0 0
    %533 = vmatprep.subr.bf16.mxu0 0
    %534 = vmatpush1.bf16.msra.mxu0 0
    %535 = vmatprep.subr.bf16.mxu0 0
    %536 = vmatpush1.bf16.msra.mxu0 0
    %537 = vmatprep.subr.bf16.mxu0 0
    %538 = vmatpush1.bf16.msra.mxu0 0
    %539 = vmatprep.subr.bf16.mxu0 0
    %540 = vmatpush1.bf16.msra.mxu0 0
    %541 = vmatprep.subr.bf16.mxu0 0
    %542 = vmatpush1.bf16.msra.mxu0 0
    %543 = vmatprep.subr.bf16.mxu0 0
    %544 = vmatpush1.bf16.msra.mxu0 0
    %545 = vmatprep.subr.bf16.mxu0 0
    %546 = vmatpush1.bf16.msra.mxu0 0
    %547 = vmatprep.mubr.bf16.mxu0 0
    %548 = vmatmul.mubr.bf16.gmra.mrb[0].mxu0 %v513
    %v549 = vpop.f32.mrb[0].mxu0
    %v550 = vadd.f32 %v510, %v549
    %v551 = vpop.f32.mrb[0].mxu0
    %v552 = vpop.f32.mrb[0].mxu0
    %v553 = vadd.f32 %v511, %v552
    %v554 = vpop.f32.mrb[0].mxu0
    %555 = vdwg.mxu0
    %v556 = vadd.f32 %v460, %v550
    %v557 = vadd.f32 %v461, %v553
    %558 = vst [vmem:[#allocation4 + $0x10] sm:$0xff] %v550
    %559 = vst [vmem:[#allocation4 + $0x18] sm:$0xff] %v553
    %v560 = vsub.f32 %v556, %v351
    %v561 = vsub.f32 %v557, %v354
    %v562 = vpack.c.bf16 %v561, %v560
    %563 = vmatprep.subr.bf16.mxu0 0
    %564 = vmatpush1.bf16.msra.mxu0 %v87
    %565 = vmatprep.subr.bf16.mxu0 0
    %566 = vmatpush1.bf16.msra.mxu0 %v88
    %567 = vmatprep.subr.bf16.mxu0 0
    %568 = vmatpush1.bf16.msra.mxu0 %v89
    %569 = vmatprep.subr.bf16.mxu0 0
    %570 = vmatpush1.bf16.msra.mxu0 %v90
    %571 = vmatprep.subr.bf16.mxu0 0
    %572 = vmatpush1.bf16.msra.mxu0 %v91
    %573 = vmatprep.subr.bf16.mxu0 0
    %574 = vmatpush1.bf16.msra.mxu0 %v92
    %575 = vmatprep.subr.bf16.mxu0 0
    %576 = vmatpush1.bf16.msra.mxu0 %v93
    %577 = vmatprep.subr.bf16.mxu0 0
    %578 = vmatpush1.bf16.msra.mxu0 %v94
    %579 = vmatprep.subr.bf16.mxu0 0
    %580 = vmatpush1.bf16.msra.mxu0 0
    %581 = vmatprep.subr.bf16.mxu0 0
    %582 = vmatpush1.bf16.msra.mxu0 0
    %583 = vmatprep.subr.bf16.mxu0 0
    %584 = vmatpush1.bf16.msra.mxu0 0
    %585 = vmatprep.subr.bf16.mxu0 0
    %586 = vmatpush1.bf16.msra.mxu0 0
    %587 = vmatprep.subr.bf16.mxu0 0
    %588 = vmatpush1.bf16.msra.mxu0 0
    %589 = vmatprep.subr.bf16.mxu0 0
    %590 = vmatpush1.bf16.msra.mxu0 0
    %591 = vmatprep.subr.bf16.mxu0 0
    %592 = vmatpush1.bf16.msra.mxu0 0
    %593 = vmatprep.subr.bf16.mxu0 0
    %594 = vmatpush1.bf16.msra.mxu0 0
    %595 = vmatprep.mubr.bf16.mxu0 0
    %596 = vmatmul.mubr.bf16.gmra.mrb[0].mxu0 %v562
    %v597 = vpop.f32.mrb[0].mxu0
    %v598 = vadd.f32 0.0, %v597
    %v599 = vpop.f32.mrb[0].mxu0
    %v600 = vpop.f32.mrb[0].mxu0
    %v601 = vadd.f32 0.0, %v600
    %v602 = vpop.f32.mrb[0].mxu0
    %603 = vdwg.mxu0
    %s604 = scalar_lea.vmem %s1, 32
    %v605 = vld [vmem:[%s604] sm:$0xff]
    %v606 = vld [vmem:[%s604 + $0x8] sm:$0xff]
    %v607 = vpack.c.bf16 %v606, %v605
    %v608 = vpack.c.bf16 %v601, %v598
    %s609 = scalar_lea.vmem %s8, 32
    %v610 = vld [vmem:[%s609] sm:$0xff]
    %v611 = vld [vmem:[%s609 + $0x8] sm:$0xff]
    %v613 = vsel %vm411, %v607, 0
    %615 = vmatprep.subr.bf16.mxu0 0
    %616 = vmatpush1.bf16.msra.mxu0 %v608
    %617 = vmatprep.subr.bf16.mxu0 0
    %618 = vmatpush1.bf16.msra.mxu0 0
    %619 = vmatprep.subr.bf16.mxu0 0
    %620 = vmatpush1.bf16.msra.mxu0 0
    %621 = vmatprep.subr.bf16.mxu0 0
    %622 = vmatpush1.bf16.msra.mxu0 0
    %623 = vmatprep.subr.bf16.mxu0 0
    %624 = vmatpush1.bf16.msra.mxu0 0
    %625 = vmatprep.subr.bf16.mxu0 0
    %626 = vmatpush1.bf16.msra.mxu0 0
    %627 = vmatprep.subr.bf16.mxu0 0
    %628 = vmatpush1.bf16.msra.mxu0 0
    %629 = vmatprep.subr.bf16.mxu0 0
    %630 = vmatpush1.bf16.msra.mxu0 0
    %631 = vmatprep.subr.bf16.mxu0 0
    %632 = vmatpush1.bf16.msra.mxu0 0
    %633 = vmatprep.subr.bf16.mxu0 0
    %634 = vmatpush1.bf16.msra.mxu0 0
    %635 = vmatprep.subr.bf16.mxu0 0
    %636 = vmatpush1.bf16.msra.mxu0 0
    %637 = vmatprep.subr.bf16.mxu0 0
    %638 = vmatpush1.bf16.msra.mxu0 0
    %639 = vmatprep.subr.bf16.mxu0 0
    %640 = vmatpush1.bf16.msra.mxu0 0
    %641 = vmatprep.subr.bf16.mxu0 0
    %642 = vmatpush1.bf16.msra.mxu0 0
    %643 = vmatprep.subr.bf16.mxu0 0
    %644 = vmatpush1.bf16.msra.mxu0 0
    %645 = vmatprep.subr.bf16.mxu0 0
    %646 = vmatpush1.bf16.msra.mxu0 0
    %647 = vmatprep.mubr.bf16.mxu0 0
    %648 = vmatmul.mubr.bf16.gmra.mrb[0].mxu0 %v613
    %v649 = vpop.f32.mrb[0].mxu0
    %v650 = vadd.f32 %v610, %v649
    %v651 = vpop.f32.mrb[0].mxu0
    %v652 = vpop.f32.mrb[0].mxu0
    %v653 = vadd.f32 %v611, %v652
    %v654 = vpop.f32.mrb[0].mxu0
    %655 = vdwg.mxu0
    %656 = vst [vmem:[#allocation4 + $0x20] sm:$0xff] %v650
    %657 = vst [vmem:[#allocation4 + $0x28] sm:$0xff] %v653
    %v658 = vmul.f32 %v450, %v550
    %v659 = vmul.f32 %v453, %v553
    %v660 = vxor.u32 %v658, 2147483648
    %v661 = vxor.u32 %v659, 2147483648
    %v662 = vmul.f32 %v660, 1.442695
    %v663 = vpow.pop %v662
    %v664 = vmul.f32 %v661, 1.442695
    %v665 = vpow.pop %v664
    %v666 = vadd.f32 %v663, 1.0
    %v667 = vadd.f32 %v665, 1.0
    %v668 = vrcp.pop %v666
    %v669 = vmul.f32 1.0, %v668
    %v670 = vrcp.pop %v667
    %v671 = vmul.f32 1.0, %v670
    %672 = vst [vmem:[#allocation6] sm:$0xff] %v669
    %673 = vst [vmem:[#allocation6 + $0x8] sm:$0xff] %v671
    %v674 = vpack.c.bf16 %v671, %v669
    %v675 = vld [vmem:[%s10] sm:$0x1]
    %v677 = vlaneseq
    %v678 = vshrl.u32 %v677, 7
    %v679 = vsub.s32 0, %v678
    %v680 = vrot.slane %v675, %v679
    %682 = vmatprep.subr.bf16.mxu0 0
    %683 = vmatpush1.bf16.msra.mxu0 %v111
    %684 = vmatprep.subr.bf16.mxu0 0
    %685 = vmatpush1.bf16.msra.mxu0 %v112
    %686 = vmatprep.subr.bf16.mxu0 0
    %687 = vmatpush1.bf16.msra.mxu0 %v113
    %688 = vmatprep.subr.bf16.mxu0 0
    %689 = vmatpush1.bf16.msra.mxu0 %v114
    %690 = vmatprep.subr.bf16.mxu0 0
    %691 = vmatpush1.bf16.msra.mxu0 %v115
    %692 = vmatprep.subr.bf16.mxu0 0
    %693 = vmatpush1.bf16.msra.mxu0 %v116
    %694 = vmatprep.subr.bf16.mxu0 0
    %695 = vmatpush1.bf16.msra.mxu0 %v117
    %696 = vmatprep.subr.bf16.mxu0 0
    %697 = vmatpush1.bf16.msra.mxu0 %v118
    %698 = vmatprep.subr.bf16.mxu0 0
    %699 = vmatpush1.bf16.msra.mxu0 0
    %700 = vmatprep.subr.bf16.mxu0 0
    %701 = vmatpush1.bf16.msra.mxu0 0
    %702 = vmatprep.subr.bf16.mxu0 0
    %703 = vmatpush1.bf16.msra.mxu0 0
    %704 = vmatprep.subr.bf16.mxu0 0
    %705 = vmatpush1.bf16.msra.mxu0 0
    %706 = vmatprep.subr.bf16.mxu0 0
    %707 = vmatpush1.bf16.msra.mxu0 0
    %708 = vmatprep.subr.bf16.mxu0 0
    %709 = vmatpush1.bf16.msra.mxu0 0
    %710 = vmatprep.subr.bf16.mxu0 0
    %711 = vmatpush1.bf16.msra.mxu0 0
    %712 = vmatprep.subr.bf16.mxu0 0
    %713 = vmatpush1.bf16.msra.mxu0 0
    %714 = vmatprep.mubr.bf16.mxu0 0
    %715 = vmatmul.mubr.bf16.gmra.mrb[0].mxu0 %v674
    %v716 = vpop.f32.mrb[0].mxu0
    %v717 = vadd.f32 %v680, %v716
    %v718 = vpop.f32.mrb[0].mxu0
    %v719 = vpop.f32.mrb[0].mxu0
    %v720 = vadd.f32 %v680, %v719
    %v721 = vpop.f32.mrb[0].mxu0
    %722 = vdwg.mxu0
    %723 = vst.msk [vmem:[%s14] sm:$0xff] %vm144, %v717
    %724 = vst.msk [vmem:[%s14 + $0x8] sm:$0xff] %vm144, %v720
    // Predicated region
    $region46: #{net_forward.1} parent=1 // pred_check
      _
    $region47: #{net_forward.1} parent=1 // pred_check_branch
      %726 = sbr.rel (0) target = $region49
    $region48: #{net_forward.1} parent=1 // pred_region
      %s728 = ssub.s32 768, 768
      %729 = vsyncadd [#allocation3], %s728
      %s730 = sshll.u32 [#allocation2], 4
      %s731 = int_to_ptr.vmem [resolvable:$true] %s730
      %736 = dma.vmem_to_hbm [thread:$0]  %s731, 768, %s11, [#allocation3], 128, 128, 8
    $region49: #{net_forward.1} parent=1 // pred_fallthru
      _
    // Predicated region
    $region50: #{net_forward.1} parent=1 // pred_check
      _
    $region51: #{net_forward.1} parent=1 // pred_check_branch
      %738 = sbr.rel (0) target = $region53
    $region52: #{net_forward.1} parent=1 // pred_region
      %s740 = ssub.s32 768, 768
      %741 = vsyncadd [#allocation5], %s740
      %s742 = sshll.u32 [#allocation4], 4
      %s743 = int_to_ptr.vmem [resolvable:$true] %s742
      %748 = dma.vmem_to_hbm [thread:$0]  %s743, 768, %s12, [#allocation5], 128, 128, 8
    $region53: #{net_forward.1} parent=1 // pred_fallthru
      _
    // Predicated region
    $region54: #{net_forward.1} parent=1 // pred_check
      _
    $region55: #{net_forward.1} parent=1 // pred_check_branch
      %750 = sbr.rel (0) target = $region57
    $region56: #{net_forward.1} parent=1 // pred_region
      %s752 = ssub.s32 256, 256
      %753 = vsyncadd [#allocation5], %s752
      %s754 = sshll.u32 [#allocation6], 4
      %s755 = int_to_ptr.vmem [resolvable:$true] %s754
      %760 = dma.vmem_to_hbm [thread:$0]  %s755, 256, %s13, [#allocation5], 128, 128, 8
    $region57: #{net_forward.1} parent=1 // pred_fallthru
      _
    // Predicated region
    $region58: #{net_forward.1} parent=1 // pred_check
      _
    $region59: #{net_forward.1} parent=1 // pred_check_branch
      %762 = sbr.rel (0) target = $region61
    $region60: #{net_forward.1} parent=1 // pred_region
      _
    $region61: #{net_forward.1} parent=1 // pred_fallthru
      _
    // Predicated region
    $region62: #{net_forward.1} parent=1 // pred_check
      _
    $region63: #{net_forward.1} parent=1 // pred_check_branch
      %764 = sbr.rel (0) target = $region65
    $region64: #{net_forward.1} parent=1 // pred_region
      %765 = dma.done [#allocation3], 768
    $region65: #{net_forward.1} parent=1 // pred_fallthru
      _
    // Predicated region
    $region66: #{net_forward.1} parent=1 // pred_check
      _
    $region67: #{net_forward.1} parent=1 // pred_check_branch
      %767 = sbr.rel (0) target = $region69
    $region68: #{net_forward.1} parent=1 // pred_region
      %768 = dma.done [#allocation5], 768
    $region69: #{net_forward.1} parent=1 // pred_fallthru
      _
    // Predicated region
    $region70: #{net_forward.1} parent=1 // pred_check
      _
    $region71: #{net_forward.1} parent=1 // pred_check_branch
      %770 = sbr.rel (0) target = $region73
    $region72: #{net_forward.1} parent=1 // pred_region
      %771 = dma.done [#allocation5], 256
    $region73: #{net_forward.1} parent=1 // pred_fallthru
      _
    // Predicated region
    $region74: #{net_forward.1} parent=1 // pred_check
      _
    $region75: #{net_forward.1} parent=1 // pred_check_branch
      %773 = sbr.rel (0) target = $region77
    $region76: #{net_forward.1} parent=1 // pred_region
      _
    $region77: #{net_forward.1} parent=1 // pred_fallthru
      _
    %774 = vsyncpa [#allocation3], 1
    %775 = vsyncpa [#allocation5], 1

</llo_original>
